<compile_context>
chip_gen: v6e
topology: v6e:2x2x1
jax: 0.10.0
libtpu: 0.0.40
codegen_flags: <defaults>
</compile_context>

<pallas_src>
import jax
import jax.numpy as jnp
from jax.experimental import pallas as pl
from jax.experimental.pallas import tpu as pltpu


# ---------------------------------------------------------------------------
# Small-batch latency path: VPU/XLU/EUP only, no MXU.
# ---------------------------------------------------------------------------
def _policy_vpu_kernel(x_ref, w1_ref, b1_ref, w2t_ref, b2_ref, o_ref):
    # x: (B, S) f32, w1: (S, H), b1: (1, H), w2t: (A, H), b2: (1, A), o: (B, A)
    batch, state_dim = x_ref.shape
    hidden_dim = w1_ref.shape[1]
    action_dim = w2t_ref.shape[0]

    x = x_ref[...]

    # fc1 as `state_dim` unrolled broadcast-FMAs (outer products) on the VPU.
    h = jnp.broadcast_to(b1_ref[...], (batch, hidden_dim))
    for k in range(state_dim):  # state_dim = 4: static unroll
        h = h + x[:, k:k + 1] * w1_ref[k:k + 1, :]
    h = jnp.maximum(h, 0.0)

    # fc2 as `action_dim` lane-reductions (XLU) instead of a 128x2 matmul.
    cols = []
    for a in range(action_dim):  # action_dim = 2: static unroll
        cols.append(jnp.sum(h * w2t_ref[a:a + 1, :], axis=-1, keepdims=True))
    logits = jnp.concatenate(cols, axis=-1) + b2_ref[...]

    # numerically stable softmax over dim=1; reciprocal on the EUP slot.
    m = jnp.max(logits, axis=-1, keepdims=True)
    e = jnp.exp(logits - m)
    denom = jnp.sum(e, axis=-1, keepdims=True)
    o_ref[...] = (e * pl.reciprocal(denom, approx=True)).astype(o_ref.dtype)


# ---------------------------------------------------------------------------
# Batched throughput path: bf16 MXU matmuls, f32 accumulation + softmax.
# ---------------------------------------------------------------------------
def _policy_mxu_kernel(x_ref, w1_ref, b1_ref, w2_ref, b2_ref, o_ref):
    # x: (TB, S) bf16, w1: (S, H) bf16, b1: (1, H) f32, w2: (H, A) bf16,
    # b2: (1, A) f32, o: (TB, A) f32
    h = jnp.dot(x_ref[...], w1_ref[...], preferred_element_type=jnp.float32)
    h = jnp.maximum(h + b1_ref[...], 0.0)

    logits = jnp.dot(h.astype(jnp.bfloat16), w2_ref[...],
                     preferred_element_type=jnp.float32) + b2_ref[...]

    m = jnp.max(logits, axis=-1, keepdims=True)
    e = jnp.exp(logits - m)
    denom = jnp.sum(e, axis=-1, keepdims=True)
    o_ref[...] = (e * pl.reciprocal(denom, approx=True)).astype(o_ref.dtype)


_SMALL_BATCH_THRESHOLD = 128  # below this the kernel is launch-latency bound


def policy_net_forward(x, w1, b1, w2, b2, *, block_b=256):
    """Fused fc1 -> ReLU -> fc2 -> softmax(dim=1)."""
    batch, state_dim = x.shape
    hidden_dim = w1.shape[1]
    action_dim = w2.shape[1]

    if batch < _SMALL_BATCH_THRESHOLD:
        # Latency path: one grid-less call, everything in VMEM, no MXU.
        # TODO(synk): for real rollout loops, pre-transpose w2 once outside the loop.
        return pl.pallas_call(
            _policy_vpu_kernel,
            out_shape=jax.ShapeDtypeStruct((batch, action_dim), jnp.float32),
            in_specs=[pl.BlockSpec(memory_space=pltpu.MemorySpace.VMEM)] * 5,
            out_specs=pl.BlockSpec(memory_space=pltpu.MemorySpace.VMEM),
        )(x, w1, b1, jnp.transpose(w2), b2)

    # Throughput path: tile the batch axis, keep weights VMEM-resident across
    # grid steps (constant index_maps), bf16 on the MXU, f32 accumulate.
    block_b = min(block_b, batch)
    grid = (pl.cdiv(batch, block_b),)

    xb = x.astype(jnp.bfloat16)
    w1b = w1.astype(jnp.bfloat16)
    w2b = w2.astype(jnp.bfloat16)

    return pl.pallas_call(
        _policy_mxu_kernel,
        out_shape=jax.ShapeDtypeStruct((batch, action_dim), jnp.float32),
        grid=grid,
        in_specs=[
            pl.BlockSpec((block_b, state_dim), lambda i: (i, 0)),       # x tile
            pl.BlockSpec((state_dim, hidden_dim), lambda i: (0, 0)),    # w1 resident
            pl.BlockSpec((1, hidden_dim), lambda i: (0, 0)),            # b1 resident
            pl.BlockSpec((hidden_dim, action_dim), lambda i: (0, 0)),   # w2 resident
            pl.BlockSpec((1, action_dim), lambda i: (0, 0)),            # b2 resident
        ],
        out_specs=pl.BlockSpec((block_b, action_dim), lambda i: (i, 0)),
        compiler_params=pltpu.CompilerParams(
            dimension_semantics=("parallel",),  # shards batch across v7x's 2 TCs
        ),
    )(xb, w1b, b1, w2b, b2)


def init_params(key, state_dim, hidden_dim, action_dim):
    """Deterministic synthetic init mimicking torch.nn.Linear's U(-1/sqrt(fan_in), ...)."""
    k1, k2, k3, k4 = jax.random.split(key, 4)
    bound1 = 1.0 / jnp.sqrt(jnp.float32(state_dim))
    bound2 = 1.0 / jnp.sqrt(jnp.float32(hidden_dim))
    w1 = jax.random.uniform(k1, (state_dim, hidden_dim), jnp.float32, -bound1, bound1)
    b1 = jax.random.uniform(k2, (1, hidden_dim), jnp.float32, -bound1, bound1)
    w2 = jax.random.uniform(k3, (hidden_dim, action_dim), jnp.float32, -bound2, bound2)
    b2 = jax.random.uniform(k4, (1, action_dim), jnp.float32, -bound2, bound2)
    return w1, b1, w2, b2


if __name__ == "__main__":
    # CartPole-v0: state_dim = 4, action_dim = 2, hidden_dim = 128
    state_dim, hidden_dim, action_dim = 4, 128, 2

    key = jax.random.PRNGKey(0)
    k_xs, k_xb, k_p = jax.random.split(key, 3)
    w1, b1, w2, b2 = init_params(k_p, state_dim, hidden_dim, action_dim)

    def ref_forward(x):
        h = jnp.maximum(x @ w1 + b1, 0.0)
        return jax.nn.softmax(h @ w2 + b2, axis=1)

    # --- small-batch latency path (single rollout step) ---
    x_small = jax.random.normal(k_xs, (8, state_dim), jnp.float32)
    p_small = jax.block_until_ready(policy_net_forward(x_small, w1, b1, w2, b2))
    assert p_small.shape == (8, action_dim)
    assert jnp.allclose(p_small, ref_forward(x_small), atol=1e-2), "small-path mismatch"
    assert jnp.allclose(jnp.sum(p_small, axis=1), 1.0, atol=1e-2)

    # --- batched throughput path (many env steps fused into one call) ---
    x_big = jax.random.normal(k_xb, (512, state_dim), jnp.float32)
    p_big = jax.block_until_ready(policy_net_forward(x_big, w1, b1, w2, b2))
    assert p_big.shape == (512, action_dim)
    assert jnp.allclose(p_big, ref_forward(x_big), atol=3e-2), "batched-path mismatch"
    assert jnp.allclose(jnp.sum(p_big, axis=1), 1.0, atol=1e-2)

    print("KERNEL_OK")
</pallas_src>

<mosaic_0001>
module attributes {stable_mosaic.version = 11 : i64} {
  func.func @_policy_vpu_kernel(%arg0: memref<8x4xf32, #tpu.memory_space<vmem>>, %arg1: memref<4x128xf32, #tpu.memory_space<vmem>>, %arg2: memref<1x128xf32, #tpu.memory_space<vmem>>, %arg3: memref<2x128xf32, #tpu.memory_space<vmem>>, %arg4: memref<1x2xf32, #tpu.memory_space<vmem>>, %arg5: memref<8x2xf32, #tpu.memory_space<vmem>>) attributes {dimension_semantics = [], scalar_prefetch = 0 : i64, scratch_operands = 0 : i64, tpu.core_type = #tpu.core_type<tc>} {
    %c0 = arith.constant 0 : index
    %c0_0 = arith.constant 0 : index
    %0 = vector.load %arg0[%c0, %c0_0] : memref<8x4xf32, #tpu.memory_space<vmem>>, vector<8x4xf32>
    %c0_1 = arith.constant 0 : index
    %c0_2 = arith.constant 0 : index
    %1 = vector.load %arg2[%c0_1, %c0_2] : memref<1x128xf32, #tpu.memory_space<vmem>>, vector<1x128xf32>
    %2 = vector.shape_cast %1 : vector<1x128xf32> to vector<1x128xf32>
    %3 = vector.broadcast %2 : vector<1x128xf32> to vector<8x128xf32>
    %4 = vector.extract_strided_slice %0 {offsets = [0, 0], sizes = [8, 1], strides = [1, 1]} : vector<8x4xf32> to vector<8x1xf32>
    %c0_3 = arith.constant 0 : index
    %c0_4 = arith.constant 0 : index
    %5 = vector.load %arg1[%c0_3, %c0_4] : memref<4x128xf32, #tpu.memory_space<vmem>>, vector<1x128xf32>
    %6 = vector.broadcast %4 : vector<8x1xf32> to vector<8x128xf32>
    %7 = vector.broadcast %5 : vector<1x128xf32> to vector<8x128xf32>
    %8 = arith.mulf %6, %7 : vector<8x128xf32>
    %9 = arith.addf %3, %8 : vector<8x128xf32>
    %10 = vector.extract_strided_slice %0 {offsets = [0, 1], sizes = [8, 1], strides = [1, 1]} : vector<8x4xf32> to vector<8x1xf32>
    %c1 = arith.constant 1 : index
    %c0_5 = arith.constant 0 : index
    %11 = vector.load %arg1[%c1, %c0_5] : memref<4x128xf32, #tpu.memory_space<vmem>>, vector<1x128xf32>
    %12 = vector.broadcast %10 : vector<8x1xf32> to vector<8x128xf32>
    %13 = vector.broadcast %11 : vector<1x128xf32> to vector<8x128xf32>
    %14 = arith.mulf %12, %13 : vector<8x128xf32>
    %15 = arith.addf %9, %14 : vector<8x128xf32>
    %16 = vector.extract_strided_slice %0 {offsets = [0, 2], sizes = [8, 1], strides = [1, 1]} : vector<8x4xf32> to vector<8x1xf32>
    %c2 = arith.constant 2 : index
    %c0_6 = arith.constant 0 : index
    %17 = vector.load %arg1[%c2, %c0_6] : memref<4x128xf32, #tpu.memory_space<vmem>>, vector<1x128xf32>
    %18 = vector.broadcast %16 : vector<8x1xf32> to vector<8x128xf32>
    %19 = vector.broadcast %17 : vector<1x128xf32> to vector<8x128xf32>
    %20 = arith.mulf %18, %19 : vector<8x128xf32>
    %21 = arith.addf %15, %20 : vector<8x128xf32>
    %22 = vector.extract_strided_slice %0 {offsets = [0, 3], sizes = [8, 1], strides = [1, 1]} : vector<8x4xf32> to vector<8x1xf32>
    %c3 = arith.constant 3 : index
    %c0_7 = arith.constant 0 : index
    %23 = vector.load %arg1[%c3, %c0_7] : memref<4x128xf32, #tpu.memory_space<vmem>>, vector<1x128xf32>
    %24 = vector.broadcast %22 : vector<8x1xf32> to vector<8x128xf32>
    %25 = vector.broadcast %23 : vector<1x128xf32> to vector<8x128xf32>
    %26 = arith.mulf %24, %25 : vector<8x128xf32>
    %27 = arith.addf %21, %26 : vector<8x128xf32>
    %cst = arith.constant 0.000000e+00 : f32
    %28 = vector.broadcast %cst : f32 to vector<8x128xf32>
    %29 = arith.maximumf %27, %28 : vector<8x128xf32>
    %c0_8 = arith.constant 0 : index
    %c0_9 = arith.constant 0 : index
    %30 = vector.load %arg3[%c0_8, %c0_9] : memref<2x128xf32, #tpu.memory_space<vmem>>, vector<1x128xf32>
    %31 = vector.broadcast %30 : vector<1x128xf32> to vector<8x128xf32>
    %32 = arith.mulf %29, %31 : vector<8x128xf32>
    %cst_10 = arith.constant dense<0.000000e+00> : vector<8xf32>
    %33 = vector.multi_reduction <add>, %32, %cst_10 [1] : vector<8x128xf32> to vector<8xf32>
    %34 = vector.shape_cast %33 : vector<8xf32> to vector<8x1xf32>
    %c1_11 = arith.constant 1 : index
    %c0_12 = arith.constant 0 : index
    %35 = vector.load %arg3[%c1_11, %c0_12] : memref<2x128xf32, #tpu.memory_space<vmem>>, vector<1x128xf32>
    %36 = vector.broadcast %35 : vector<1x128xf32> to vector<8x128xf32>
    %37 = arith.mulf %29, %36 : vector<8x128xf32>
    %cst_13 = arith.constant dense<0.000000e+00> : vector<8xf32>
    %38 = vector.multi_reduction <add>, %37, %cst_13 [1] : vector<8x128xf32> to vector<8xf32>
    %39 = vector.shape_cast %38 : vector<8xf32> to vector<8x1xf32>
    %40 = tpu.concatenate %34, %39 in 1 : vector<8x1xf32>, vector<8x1xf32> -> vector<8x2xf32>
    %c0_14 = arith.constant 0 : index
    %c0_15 = arith.constant 0 : index
    %41 = vector.load %arg4[%c0_14, %c0_15] : memref<1x2xf32, #tpu.memory_space<vmem>>, vector<1x2xf32>
    %42 = vector.broadcast %41 : vector<1x2xf32> to vector<8x2xf32>
    %43 = arith.addf %40, %42 : vector<8x2xf32>
    %cst_16 = arith.constant dense<0xFF800000> : vector<8xf32>
    %44 = vector.multi_reduction <maximumf>, %43, %cst_16 [1] : vector<8x2xf32> to vector<8xf32>
    %45 = vector.shape_cast %44 : vector<8xf32> to vector<8x1xf32>
    %46 = vector.broadcast %45 : vector<8x1xf32> to vector<8x2xf32>
    %47 = arith.subf %43, %46 : vector<8x2xf32>
    %48 = math.exp %47 : vector<8x2xf32>
    %cst_17 = arith.constant dense<0.000000e+00> : vector<8xf32>
    %49 = vector.multi_reduction <add>, %48, %cst_17 [1] : vector<8x2xf32> to vector<8xf32>
    %50 = vector.shape_cast %49 : vector<8xf32> to vector<8x1xf32>
    %51 = tpu.reciprocal %50 {approx = true} : vector<8x1xf32> -> vector<8x1xf32>
    %52 = vector.broadcast %51 : vector<8x1xf32> to vector<8x2xf32>
    %53 = arith.mulf %48, %52 : vector<8x2xf32>
    %c0_18 = arith.constant 0 : index
    %c0_19 = arith.constant 0 : index
    %54 = vector.load %arg5[%c0_18, %c0_19] : memref<8x2xf32, #tpu.memory_space<vmem>>, vector<8x2xf32>
    tpu.vector_store %arg5[%c0_18, %c0_19], %53 {strides = array<i32>} : memref<8x2xf32, #tpu.memory_space<vmem>>, vector<8x2xf32>,
    return
  }
}

</mosaic_0001>

<llo_original>
// kernel: tpu_custom_call.1
$region0: #{tpu_custom_call.1}
  #allocation0 [shape = 'u32[]', space=smem, size = 0x4, offset = 0x4, fixed_abs, tag = 'smem constant byte address 0x4 - core index']
  #allocation1 [shape = 'u32[144,128]{1,0:T(1,128)}', space=vmem, size = 0x12000, scoped, tag = 'internal scratch']
  %s0 = inlined_call_operand.vmem [shape: f32[8,4], index: 0, kind: input, shape index: {}]
  %s1 = inlined_call_operand.vmem [shape: f32[4,128], index: 1, kind: input, shape index: {}]
  %s2 = inlined_call_operand.vmem [shape: f32[1,128], index: 2, kind: input, shape index: {}]
  %s3 = inlined_call_operand.vmem [shape: f32[2,128], index: 3, kind: input, shape index: {}]
  %s4 = inlined_call_operand.vmem [shape: f32[1,2], index: 4, kind: input, shape index: {}]
  %s5 = inlined_call_operand.vmem [shape: f32[8,2], index: 5, kind: output, shape index: {}]
  %s6 = sld [smem:[#allocation0]]
  $region30: #{tpu_custom_call.1} parent=0
    _
  %s8 = ssub.s32 1, %s6
  %s9 = scalar_select 0, %s8, %s6
  // Predicated region
  $region2: #{tpu_custom_call.1} parent=0 // pred_check
    _
  $region3: #{tpu_custom_call.1} parent=0 // pred_check_branch
    %11 = sbr.rel (0) target = $region5
  $region4: #{tpu_custom_call.1} parent=0 // pred_region
    _
  $region5: #{tpu_custom_call.1} parent=0 // pred_fallthru
    _
  // Predicated region
  $region6: #{tpu_custom_call.1} parent=0 // pred_check
    _
  $region7: #{tpu_custom_call.1} parent=0 // pred_check_branch
    %13 = sbr.rel (0) target = $region9
  $region8: #{tpu_custom_call.1} parent=0 // pred_region
    _
  $region9: #{tpu_custom_call.1} parent=0 // pred_fallthru
    _
  // Predicated region
  $region10: #{tpu_custom_call.1} parent=0 // pred_check
    _
  $region11: #{tpu_custom_call.1} parent=0 // pred_check_branch
    %15 = sbr.rel (0) target = $region13
  $region12: #{tpu_custom_call.1} parent=0 // pred_region
    _
  $region13: #{tpu_custom_call.1} parent=0 // pred_fallthru
    _
  // Predicated region
  $region14: #{tpu_custom_call.1} parent=0 // pred_check
    _
  $region15: #{tpu_custom_call.1} parent=0 // pred_check_branch
    %17 = sbr.rel (0) target = $region17
  $region16: #{tpu_custom_call.1} parent=0 // pred_region
    _
  $region17: #{tpu_custom_call.1} parent=0 // pred_fallthru
    _
  // Predicated region
  $region18: #{tpu_custom_call.1} parent=0 // pred_check
    _
  $region19: #{tpu_custom_call.1} parent=0 // pred_check_branch
    %19 = sbr.rel (0) target = $region21
  $region20: #{tpu_custom_call.1} parent=0 // pred_region
    _
  $region21: #{tpu_custom_call.1} parent=0 // pred_fallthru
    _
  %v20 = vld [vmem:[%s0] sm:$0xff]
  %v21 = vld [vmem:[%s2] sm:$0x1]
  %v23 = vlaneseq
  %v24 = vshrl.u32 %v23, 7
  %v25 = vsub.s32 0, %v24
  %v26 = vrot.slane %v21, %v25
  %v28 = vld [vmem:[%s1] sm:$0x1]
  %30 = vset.pattern.permute.xlu0 0
  %31 = vperm.xlu0 %30, %v20
  %v32 = vpop.permute.xlu0 %31
  %v34 = vlaneseq
  %v35 = vshrl.u32 %v34, 7
  %v36 = vsub.s32 0, %v35
  %v37 = vrot.slane %v28, %v36
  %v38 = vmul.f32 %v32, %v37
  %v39 = vadd.f32 %v26, %v38
  %v40 = vld [vmem:[%s1 + $0x1] sm:$0x1]
  %41 = vset.pattern.permute.xlu0 1
  %42 = vperm.xlu0 %41, %v20
  %v43 = vpop.permute.xlu0 %42
  %v45 = vlaneseq
  %v46 = vshrl.u32 %v45, 7
  %v47 = vsub.s32 0, %v46
  %v48 = vrot.slane %v40, %v47
  %v49 = vmul.f32 %v43, %v48
  %v50 = vadd.f32 %v39, %v49
  %v51 = vld [vmem:[%s1 + $0x2] sm:$0x1]
  %52 = vset.pattern.permute.xlu0 2
  %53 = vperm.xlu0 %52, %v20
  %v54 = vpop.permute.xlu0 %53
  %v56 = vlaneseq
  %v57 = vshrl.u32 %v56, 7
  %v58 = vsub.s32 0, %v57
  %v59 = vrot.slane %v51, %v58
  %v60 = vmul.f32 %v54, %v59
  %v61 = vadd.f32 %v50, %v60
  %v62 = vld [vmem:[%s1 + $0x3] sm:$0x1]
  %63 = vset.pattern.permute.xlu0 3
  %64 = vperm.xlu0 %63, %v20
  %v65 = vpop.permute.xlu0 %64
  %v67 = vlaneseq
  %v68 = vshrl.u32 %v67, 7
  %v69 = vsub.s32 0, %v68
  %v70 = vrot.slane %v62, %v69
  %v71 = vmul.f32 %v65, %v70
  %v72 = vadd.f32 %v61, %v71
  %v73 = vmax.f32 %v72, 0.0
  %v74 = vld [vmem:[%s3] sm:$0x1]
  %v75 = vlaneseq
  %v76 = vshrl.u32 %v75, 7
  %v77 = vsub.s32 0, %v76
  %v78 = vrot.slane %v74, %v77
  %v79 = vmul.f32 %v73, %v78
  %80 = vadd.xlane.f32.xlu0 %v79
  %v81 = vpop.xlane.xlu0 %80
  %v82 = vld [vmem:[%s3 + $0x1] sm:$0x1]
  %v83 = vlaneseq
  %v84 = vshrl.u32 %v83, 7
  %v85 = vsub.s32 0, %v84
  %v86 = vrot.slane %v82, %v85
  %v87 = vmul.f32 %v73, %v86
  %88 = vadd.xlane.f32.xlu0 %v87
  %v89 = vpop.xlane.xlu0 %88
  %vm90 = vcmask 7168
  %v91 = vsel %vm90, %v81, %v89
  %v92 = vld [vmem:[%s4] sm:$0x1]
  %v94 = vlaneseq
  %v95 = vshrl.u32 %v94, 7
  %v96 = vsub.s32 0, %v95
  %v97 = vrot.slane %v92, %v96
  %v99 = vadd.f32 %v91, %v97
  %vm100 = vcmask 15360
  %v101 = vsel %vm100, %v99, -inf
  %102 = vmax.xlane.f32.xlu0 %v101
  %v103 = vpop.xlane.xlu0 %102
  %v104 = vsub.f32 %v99, %v103
  %v105 = vmul.f32 %v104, 1.442695
  %v106 = vpow.pop %v105
  %v107 = vsel %vm100, %v106, 0.0
  %108 = vadd.xlane.f32.xlu0 %v107
  %v109 = vpop.xlane.xlu0 %108
  %v110 = vrcp.pop %v109
  %v111 = vmul.f32 %v106, %v110
  %112 = vst.msk [vmem:[%s5] sm:$0xff] %vm100, %v111
  // Predicated region
  $region22: #{tpu_custom_call.1} parent=0 // pred_check
    _
  $region23: #{tpu_custom_call.1} parent=0 // pred_check_branch
    %114 = sbr.rel (0) target = $region25
  $region24: #{tpu_custom_call.1} parent=0 // pred_region
    _
  $region25: #{tpu_custom_call.1} parent=0 // pred_fallthru
    _
  // Predicated region
  $region26: #{tpu_custom_call.1} parent=0 // pred_check
    _
  $region27: #{tpu_custom_call.1} parent=0 // pred_check_branch
    %116 = sbr.rel (0) target = $region29
  $region28: #{tpu_custom_call.1} parent=0 // pred_region
    _
  $region29: #{tpu_custom_call.1} parent=0 // pred_fallthru
    _

</llo_original>
